<compile_context>
chip_gen: v6e
topology: v6e:2x2x1
jax: 0.10.0
libtpu: 0.0.40
codegen_flags: <defaults>
</compile_context>

<pallas_src>
import functools

import jax
import jax.numpy as jnp
from jax.experimental import pallas as pl
from jax.experimental.pallas import tpu as pltpu


def _conv1d_out_len(length, kernel, padding, dilation, stride=1):
    return (length + 2 * padding - dilation * (kernel - 1) - 1) // stride + 1


def _conv_norm_act_kernel(x_ref, w_ref, p_ref, o_ref, col_ref, *,
                          kernel_size, cin, t_in, t_out, padding, dilation,
                          eps, apply_norm, residual, act):
    # x_ref:   (Cin, T)        un-padded input row (batch dim squeezed away)
    # w_ref:   (Cout, K*Cin)   im2col weights, VMEM-resident across the grid
    # p_ref:   (3, Cout, 1)    stacked [bias, gamma, beta] (f32, resident)
    # o_ref:   (Cout, Tout)
    # col_ref: (K*Cin, Tout)   VMEM scratch im2col buffer (compute dtype)

    # Build the im2col buffer with in-kernel zero padding of the temporal halo
    # (all slice bounds are static Python ints).
    for k in range(kernel_size):
        r0 = k * cin
        t0 = min(max(0, padding - k * dilation), t_out)
        t1 = max(min(t_out, t_in + padding - k * dilation), t0)
        if t0 > 0:
            col_ref[r0:r0 + cin, 0:t0] = jnp.zeros((cin, t0), col_ref.dtype)
        if t1 < t_out:
            col_ref[r0:r0 + cin, t1:t_out] = jnp.zeros((cin, t_out - t1), col_ref.dtype)
        if t1 > t0:
            s0 = t0 + k * dilation - padding              # >= 0
            col_ref[r0:r0 + cin, t0:t1] = \
                x_ref[:, s0:s0 + (t1 - t0)].astype(col_ref.dtype)

    # One MXU matmul over the K*Cin contraction (f32 accumulation).
    y = jnp.dot(w_ref[...], col_ref[...], preferred_element_type=jnp.float32)

    if apply_norm:
        # Conv bias is exactly cancelled by the mean subtraction -> skipped.
        # InstanceNorm1d (biased var, eps inside sqrt) folded into a single
        # per-channel scale/offset, so only one full-tile VPU pass remains.
        mean = jnp.mean(y, axis=1, keepdims=True)                       # (Cout, 1)
        var = jnp.maximum(jnp.mean(y * y, axis=1, keepdims=True) - mean * mean, 0.0)
        scale = jax.lax.rsqrt(var + jnp.float32(eps)) * p_ref[1].astype(jnp.float32)
        shift = p_ref[2].astype(jnp.float32) - mean * scale
        y = y * scale + shift
    else:
        y = y + p_ref[0].astype(jnp.float32)                            # conv bias

    if act == "relu":
        y = jnp.maximum(y, 0.0)
    elif act == "sigmoid":
        y = jax.nn.sigmoid(y)
    # 'identity': nothing to do

    if residual:
        # residual_conn guarantees Cin == Cout and Tout == T -> reuse the
        # already-loaded input block; DropPath(p=0.0) is the identity.
        y = y + x_ref[...].astype(jnp.float32)

    o_ref[...] = y.astype(o_ref.dtype)


def conv_norm_act_pallas(x, w, b, gamma, beta, *, padding=1, dilation=1,
                         act="relu", norm=True, no_residual=False, eps=1e-5):
    """x: (B, Cin, T); w: (Cout, Cin, K); b/gamma/beta: (Cout,)."""
    B, Cin, T = x.shape
    Cout, Cin_w, K = w.shape
    assert Cin_w == Cin, "grouped conv not supported"

    Tout = _conv1d_out_len(T, K, padding, dilation)

    # Mirror the module's residual decision (shape-preserving conv probe on length 128).
    residual = (not no_residual) and (Cin == Cout) and \
        (_conv1d_out_len(128, K, padding, dilation) == 128)
    apply_norm = bool(norm) and (Tout > 1)

    compute_dtype = (x.dtype if x.dtype in (jnp.dtype(jnp.bfloat16), jnp.dtype(jnp.float32))
                     else jnp.dtype(jnp.float32))

    # (Cout, Cin, K) -> (Cout, K*Cin) matching im2col row order [k*Cin + c].
    w2d = jnp.transpose(w, (0, 2, 1)).reshape(Cout, K * Cin).astype(compute_dtype)
    params = jnp.stack([b.astype(jnp.float32),
                        gamma.astype(jnp.float32),
                        beta.astype(jnp.float32)]).reshape(3, Cout, 1)

    kernel = functools.partial(
        _conv_norm_act_kernel, kernel_size=K, cin=Cin, t_in=T, t_out=Tout,
        padding=padding, dilation=dilation, eps=eps,
        apply_norm=apply_norm, residual=residual, act=act)

    in_specs = [
        pl.BlockSpec((pl.Squeezed(), Cin, T), lambda bi: (bi, 0, 0)),   # one batch row
        pl.BlockSpec((Cout, K * Cin), lambda bi: (0, 0)),               # resident weights
        pl.BlockSpec((3, Cout, 1), lambda bi: (0, 0, 0)),               # resident params
    ]

    # VMEM budget: double-buffered in/out blocks + resident params + im2col scratch
    # + in-kernel f32 intermediates + headroom; capped by the chip's physical VMEM.
    x_item = jnp.dtype(x.dtype).itemsize
    c_item = jnp.dtype(compute_dtype).itemsize
    in_bytes = x_item * Cin * T
    out_bytes = x_item * Cout * Tout
    resident_bytes = c_item * Cout * K * Cin + 4 * 3 * Cout
    col_bytes = c_item * K * Cin * Tout
    interm_bytes = 4 * Cout * Tout + 4 * Cin * T          # f32 y + f32 residual copy
    footprint = 2 * (in_bytes + out_bytes) + resident_bytes + col_bytes + interm_bytes
    try:
        phys_vmem = pltpu.get_tpu_info().vmem_capacity_bytes
    except Exception:  # pragma: no cover - conservative fallback
        phys_vmem = 64 * 1024 * 1024
    cap = max(32 * 1024 * 1024, (phys_vmem * 3) // 4)
    vmem_limit = int(min(cap, max(16 * 1024 * 1024, footprint + 4 * 1024 * 1024)))

    return pl.pallas_call(
        kernel,
        out_shape=jax.ShapeDtypeStruct((B, Cout, Tout), x.dtype),
        grid_spec=pltpu.PrefetchScalarGridSpec(
            num_scalar_prefetch=0,
            grid=(B,),
            in_specs=in_specs,
            out_specs=pl.BlockSpec((pl.Squeezed(), Cout, Tout), lambda bi: (bi, 0, 0)),
            scratch_shapes=[pltpu.VMEM((K * Cin, Tout), compute_dtype)],
        ),
        compiler_params=pltpu.CompilerParams(
            dimension_semantics=("parallel",),
            vmem_limit_bytes=vmem_limit,
        ),
    )(x, w2d, params)


def conv_norm_act_ref(x, w, b, gamma, beta, *, padding=1, dilation=1,
                      act="relu", norm=True, no_residual=False, eps=1e-5):
    """Pure-JAX reference matching the PyTorch module's forward."""
    Cout, _, K = w.shape
    y = jax.lax.conv_general_dilated(
        x.astype(jnp.float32), w.astype(jnp.float32),
        window_strides=(1,), padding=[(padding, padding)],
        rhs_dilation=(dilation,),
        dimension_numbers=("NCH", "OIH", "NCH"),
        precision=jax.lax.Precision.HIGHEST)
    y = y + b[None, :, None]
    if norm and y.shape[2] > 1:
        mean = jnp.mean(y, axis=2, keepdims=True)
        var = jnp.mean((y - mean) ** 2, axis=2, keepdims=True)
        y = (y - mean) / jnp.sqrt(var + eps)
        y = y * gamma[None, :, None] + beta[None, :, None]
    if act == "relu":
        y = jnp.maximum(y, 0.0)
    elif act == "sigmoid":
        y = jax.nn.sigmoid(y)
    residual = (not no_residual) and (x.shape[1] == Cout) and \
        (_conv1d_out_len(128, K, padding, dilation) == 128)
    if residual:
        y = y + x
    return y.astype(x.dtype)


if __name__ == "__main__":
    key = jax.random.PRNGKey(0)
    k1, k2, k3, k4, k5, k6, k7 = jax.random.split(key, 7)

    # Small, deterministic inputs (quantized so they are exactly representable,
    # keeping the kernel-vs-reference comparison independent of matmul precision).
    B, Cin, Cout, T, K = 2, 8, 8, 128, 3
    x = jnp.round(jax.random.normal(k1, (B, Cin, T), dtype=jnp.float32) * 8.0) / 8.0
    w = jnp.round(jax.random.normal(k2, (Cout, Cin, K), dtype=jnp.float32) * 8.0) / 64.0
    b = jnp.round(jax.random.normal(k3, (Cout,), dtype=jnp.float32) * 8.0) / 64.0
    gamma = 1.0 + jnp.round(jax.random.normal(k4, (Cout,), dtype=jnp.float32) * 8.0) / 64.0
    beta = jnp.round(jax.random.normal(k5, (Cout,), dtype=jnp.float32) * 8.0) / 64.0

    # Case 1: shape-preserving conv -> InstanceNorm -> ReLU -> residual add.
    out = jax.block_until_ready(
        conv_norm_act_pallas(x, w, b, gamma, beta, padding=1, act="relu"))
    ref = conv_norm_act_ref(x, w, b, gamma, beta, padding=1, act="relu")
    assert out.shape == ref.shape and out.dtype == x.dtype
    assert jnp.allclose(out, ref, atol=1e-4, rtol=1e-4), \
        f"case1 max abs err {float(jnp.max(jnp.abs(out - ref)))}"

    # Case 2: channel-expanding conv (no residual), sigmoid activation.
    Cout2 = 16
    w2 = jnp.round(jax.random.normal(k6, (Cout2, Cin, K), dtype=jnp.float32) * 8.0) / 64.0
    b2 = jnp.round(jax.random.normal(k7, (Cout2,), dtype=jnp.float32) * 8.0) / 64.0
    g2 = jnp.ones((Cout2,), jnp.float32)
    bt2 = jnp.zeros((Cout2,), jnp.float32)
    out2 = jax.block_until_ready(
        conv_norm_act_pallas(x, w2, b2, g2, bt2, padding=1, act="sigmoid"))
    ref2 = conv_norm_act_ref(x, w2, b2, g2, bt2, padding=1, act="sigmoid")
    assert jnp.allclose(out2, ref2, atol=1e-4, rtol=1e-4), \
        f"case2 max abs err {float(jnp.max(jnp.abs(out2 - ref2)))}"

    # Case 3: norm disabled, identity activation (exercises the bias-add path) + residual.
    out3 = jax.block_until_ready(
        conv_norm_act_pallas(x, w, b, gamma, beta, padding=1, act="identity", norm=False))
    ref3 = conv_norm_act_ref(x, w, b, gamma, beta, padding=1, act="identity", norm=False)
    assert jnp.allclose(out3, ref3, atol=1e-4, rtol=1e-4), \
        f"case3 max abs err {float(jnp.max(jnp.abs(out3 - ref3)))}"

    print("KERNEL_OK")
</pallas_src>

<mosaic_0001>
module attributes {stable_mosaic.version = 11 : i64} {
  func.func @_conv_norm_act_kernel(%arg0: i32, %arg1: memref<1x8x128xf32, #tpu.memory_space<vmem>>, %arg2: memref<8x24xf32, #tpu.memory_space<vmem>>, %arg3: memref<3x8x1xf32, #tpu.memory_space<vmem>>, %arg4: memref<1x8x128xf32, #tpu.memory_space<vmem>>, %arg5: memref<24x128xf32, #tpu.memory_space<vmem>>) attributes {dimension_semantics = [#tpu.dimension_semantics<parallel>], iteration_bounds = array<i64: 2>, scalar_prefetch = 0 : i64, scratch_operands = 1 : i64, tpu.core_type = #tpu.core_type<tc>, window_params = [{transform_indices = @transform_0, window_bounds = array<i64: 1, 8, 128>}, {pipeline_mode = #tpu.pipeline_mode<synchronous>, transform_indices = @transform_1, window_bounds = array<i64: 8, 24>}, {pipeline_mode = #tpu.pipeline_mode<synchronous>, transform_indices = @transform_2, window_bounds = array<i64: 3, 8, 1>}, {transform_indices = @transform_3, window_bounds = array<i64: 1, 8, 128>}]} {
    %cst = arith.constant 0.000000e+00 : f32
    %0 = vector.broadcast %cst : f32 to vector<8x1xf32>
    %c0 = arith.constant 0 : index
    %c0_0 = arith.constant 0 : index
    %1 = vector.load %arg5[%c0, %c0_0] : memref<24x128xf32, #tpu.memory_space<vmem>>, vector<8x1xf32>
    tpu.vector_store %arg5[%c0, %c0_0], %0 {strides = array<i32>} : memref<24x128xf32, #tpu.memory_space<vmem>>, vector<8x1xf32>,
    %c0_1 = arith.constant 0 : index
    %c0_2 = arith.constant 0 : index
    %c0_3 = arith.constant 0 : index
    %2 = vector.load %arg1[%c0_1, %c0_2, %c0_3] : memref<1x8x128xf32, #tpu.memory_space<vmem>>, vector<1x8x127xf32>
    %3 = vector.shape_cast %2 : vector<1x8x127xf32> to vector<8x127xf32>
    %c0_4 = arith.constant 0 : index
    %c1 = arith.constant 1 : index
    %4 = vector.load %arg5[%c0_4, %c1] : memref<24x128xf32, #tpu.memory_space<vmem>>, vector<8x127xf32>
    tpu.vector_store %arg5[%c0_4, %c1], %3 {strides = array<i32>} : memref<24x128xf32, #tpu.memory_space<vmem>>, vector<8x127xf32>,
    %c0_5 = arith.constant 0 : index
    %c0_6 = arith.constant 0 : index
    %c0_7 = arith.constant 0 : index
    %5 = vector.load %arg1[%c0_5, %c0_6, %c0_7] : memref<1x8x128xf32, #tpu.memory_space<vmem>>, vector<1x8x128xf32>
    %6 = vector.shape_cast %5 : vector<1x8x128xf32> to vector<8x128xf32>
    %c8 = arith.constant 8 : index
    %c0_8 = arith.constant 0 : index
    %7 = vector.load %arg5[%c8, %c0_8] : memref<24x128xf32, #tpu.memory_space<vmem>>, vector<8x128xf32>
    tpu.vector_store %arg5[%c8, %c0_8], %6 {strides = array<i32>} : memref<24x128xf32, #tpu.memory_space<vmem>>, vector<8x128xf32>,
    %cst_9 = arith.constant 0.000000e+00 : f32
    %8 = vector.broadcast %cst_9 : f32 to vector<8x1xf32>
    %c16 = arith.constant 16 : index
    %c127 = arith.constant 127 : index
    %9 = vector.load %arg5[%c16, %c127] : memref<24x128xf32, #tpu.memory_space<vmem>>, vector<8x1xf32>
    tpu.vector_store %arg5[%c16, %c127], %8 {strides = array<i32>} : memref<24x128xf32, #tpu.memory_space<vmem>>, vector<8x1xf32>,
    %c0_10 = arith.constant 0 : index
    %c0_11 = arith.constant 0 : index
    %c1_12 = arith.constant 1 : index
    %10 = vector.load %arg1[%c0_10, %c0_11, %c1_12] : memref<1x8x128xf32, #tpu.memory_space<vmem>>, vector<1x8x127xf32>
    %11 = vector.shape_cast %10 : vector<1x8x127xf32> to vector<8x127xf32>
    %c16_13 = arith.constant 16 : index
    %c0_14 = arith.constant 0 : index
    %12 = vector.load %arg5[%c16_13, %c0_14] : memref<24x128xf32, #tpu.memory_space<vmem>>, vector<8x127xf32>
    tpu.vector_store %arg5[%c16_13, %c0_14], %11 {strides = array<i32>} : memref<24x128xf32, #tpu.memory_space<vmem>>, vector<8x127xf32>,
    %c0_15 = arith.constant 0 : index
    %c0_16 = arith.constant 0 : index
    %13 = vector.load %arg2[%c0_15, %c0_16] : memref<8x24xf32, #tpu.memory_space<vmem>>, vector<8x24xf32>
    %c0_17 = arith.constant 0 : index
    %c0_18 = arith.constant 0 : index
    %14 = vector.load %arg5[%c0_17, %c0_18] : memref<24x128xf32, #tpu.memory_space<vmem>>, vector<24x128xf32>
    %cst_19 = arith.constant dense<0.000000e+00> : vector<8x128xf32>
    %15 = tpu.matmul %13, %14, %cst_19 {dimension_numbers = #tpu.dot_dimension_numbers<[1], [0], [0], [1], [0, 0, 1, 1], [], []>} : vector<8x24xf32>, vector<24x128xf32>, vector<8x128xf32> -> vector<8x128xf32>
    %cst_20 = arith.constant dense<0.000000e+00> : vector<8xf32>
    %16 = vector.multi_reduction <add>, %15, %cst_20 [1] : vector<8x128xf32> to vector<8xf32>
    %17 = vector.shape_cast %16 : vector<8xf32> to vector<8x1xf32>
    %cst_21 = arith.constant 1.280000e+02 : f32
    %18 = vector.broadcast %cst_21 : f32 to vector<8x1xf32>
    %19 = arith.divf %17, %18 : vector<8x1xf32>
    %20 = arith.mulf %15, %15 : vector<8x128xf32>
    %cst_22 = arith.constant dense<0.000000e+00> : vector<8xf32>
    %21 = vector.multi_reduction <add>, %20, %cst_22 [1] : vector<8x128xf32> to vector<8xf32>
    %22 = vector.shape_cast %21 : vector<8xf32> to vector<8x1xf32>
    %cst_23 = arith.constant 1.280000e+02 : f32
    %23 = vector.broadcast %cst_23 : f32 to vector<8x1xf32>
    %24 = arith.divf %22, %23 : vector<8x1xf32>
    %25 = arith.mulf %19, %19 : vector<8x1xf32>
    %26 = arith.subf %24, %25 : vector<8x1xf32>
    %cst_24 = arith.constant 0.000000e+00 : f32
    %27 = vector.broadcast %cst_24 : f32 to vector<8x1xf32>
    %28 = arith.maximumf %26, %27 : vector<8x1xf32>
    %cst_25 = arith.constant 9.99999974E-6 : f32
    %29 = vector.broadcast %cst_25 : f32 to vector<8x1xf32>
    %30 = arith.addf %28, %29 : vector<8x1xf32>
    %31 = math.rsqrt %30 : vector<8x1xf32>
    %c1_26 = arith.constant 1 : index
    %c0_27 = arith.constant 0 : index
    %c0_28 = arith.constant 0 : index
    %32 = vector.load %arg3[%c1_26, %c0_27, %c0_28] : memref<3x8x1xf32, #tpu.memory_space<vmem>>, vector<1x8x1xf32>
    %33 = vector.shape_cast %32 : vector<1x8x1xf32> to vector<8x1xf32>
    %34 = arith.mulf %31, %33 : vector<8x1xf32>
    %c2 = arith.constant 2 : index
    %c0_29 = arith.constant 0 : index
    %c0_30 = arith.constant 0 : index
    %35 = vector.load %arg3[%c2, %c0_29, %c0_30] : memref<3x8x1xf32, #tpu.memory_space<vmem>>, vector<1x8x1xf32>
    %36 = vector.shape_cast %35 : vector<1x8x1xf32> to vector<8x1xf32>
    %37 = arith.mulf %19, %34 : vector<8x1xf32>
    %38 = arith.subf %36, %37 : vector<8x1xf32>
    %39 = vector.broadcast %34 : vector<8x1xf32> to vector<8x128xf32>
    %40 = arith.mulf %15, %39 : vector<8x128xf32>
    %41 = vector.broadcast %38 : vector<8x1xf32> to vector<8x128xf32>
    %42 = arith.addf %40, %41 : vector<8x128xf32>
    %cst_31 = arith.constant 0.000000e+00 : f32
    %43 = vector.broadcast %cst_31 : f32 to vector<8x128xf32>
    %44 = arith.maximumf %42, %43 : vector<8x128xf32>
    %c0_32 = arith.constant 0 : index
    %c0_33 = arith.constant 0 : index
    %c0_34 = arith.constant 0 : index
    %45 = vector.load %arg1[%c0_32, %c0_33, %c0_34] : memref<1x8x128xf32, #tpu.memory_space<vmem>>, vector<1x8x128xf32>
    %46 = vector.shape_cast %45 : vector<1x8x128xf32> to vector<8x128xf32>
    %47 = arith.addf %44, %46 : vector<8x128xf32>
    %c0_35 = arith.constant 0 : index
    %c0_36 = arith.constant 0 : index
    %c0_37 = arith.constant 0 : index
    %48 = vector.load %arg4[%c0_35, %c0_36, %c0_37] : memref<1x8x128xf32, #tpu.memory_space<vmem>>, vector<1x8x128xf32>
    %49 = vector.shape_cast %48 : vector<1x8x128xf32> to vector<8x128xf32>
    %50 = vector.shape_cast %47 : vector<8x128xf32> to vector<1x8x128xf32>
    tpu.vector_store %arg4[%c0_35, %c0_36, %c0_37], %50 {strides = array<i32>} : memref<1x8x128xf32, #tpu.memory_space<vmem>>, vector<1x8x128xf32>,
    return
  }
  func.func @transform_0(%arg0: i32) -> (i32, i32, i32) {
    %c0_i32 = arith.constant 0 : i32
    %c0_i32_0 = arith.constant 0 : i32
    %c0_i32_1 = arith.constant 0 : i32
    return %arg0, %c0_i32, %c0_i32_0 : i32, i32, i32
  }
  func.func @transform_1(%arg0: i32) -> (i32, i32) {
    %c0_i32 = arith.constant 0 : i32
    %c0_i32_0 = arith.constant 0 : i32
    %c0_i32_1 = arith.constant 0 : i32
    return %c0_i32, %c0_i32_0 : i32, i32
  }
  func.func @transform_2(%arg0: i32) -> (i32, i32, i32) {
    %c0_i32 = arith.constant 0 : i32
    %c0_i32_0 = arith.constant 0 : i32
    %c0_i32_1 = arith.constant 0 : i32
    %c0_i32_2 = arith.constant 0 : i32
    return %c0_i32, %c0_i32_0, %c0_i32_1 : i32, i32, i32
  }
  func.func @transform_3(%arg0: i32) -> (i32, i32, i32) {
    %c0_i32 = arith.constant 0 : i32
    %c0_i32_0 = arith.constant 0 : i32
    %c0_i32_1 = arith.constant 0 : i32
    return %arg0, %c0_i32, %c0_i32_0 : i32, i32, i32
  }
}

</mosaic_0001>

<llo_original>
// kernel: tpu_custom_call.1
$region0: #{tpu_custom_call.1}
  #allocation0 [shape = 'u32[]', space=smem, size = 0x4, offset = 0x4, fixed_abs, tag = 'smem constant byte address 0x4 - core index']
  #allocation1 [shape = 'u32[144,128]{1,0:T(1,128)}', space=vmem, size = 0x12000, scoped, tag = 'internal scratch']
  #allocation2 [shape = 'f32[24,128]{1,0:T(8,128)}', space=vmem, size = 0x3000, scoped, tag = 'scratch operand']
  %s0 = inlined_call_operand.vmem [shape: f32[2,8,128], index: 0, kind: input, shape index: {}]
  %s1 = inlined_call_operand.vmem [shape: f32[8,24], index: 1, kind: input, shape index: {}]
  %s2 = inlined_call_operand.vmem [shape: f32[3,8,1], index: 2, kind: input, shape index: {}]
  %s3 = inlined_call_operand.hbm [shape: f32[2,8,128], index: 3, kind: output, shape index: {}]
  %s4 = sld [smem:[#allocation0]]
  $region45: #{tpu_custom_call.1} parent=0
    _
  %s6 = ssub.s32 1, %s4
  %s7 = scalar_select 0, %s6, %s4
  $region1: #{tpu_custom_call.1} parent=0
    #allocation3 [shape = 'u8[8192]{0}', space=vmem, size = 0x2000, scoped, tag = 'output window, operand 0']
    #allocation4 [shape = 's32[2]{0}', space=sflag, size = 0x8, scoped, tag = 'scoped memory for tpu_custom_call.1']
    %8 = vsyncpa [#allocation4], 0
    %s9 = scalar_lea.sflag [#allocation4], 1
    %10 = vsyncpa %s9, 0
    loop: start=0, step=1, limit=4
    $region2: #{tpu_custom_call.1} parent=1 // loop_pre_header
      _
    $region3: #{tpu_custom_call.1} parent=1 // loop_header
      %s12 = sphi 0, %s16
      %p13 = scmp.ge.s32.totalorder %s12, 4
      %s22 = sphi 0, %s24
      %s25 = sphi 0, %s22
      %s26 = sphi 0, %s25
      %s42 = sphi 0, %s26
      %s46 = sphi 0, %s46
      %s48 = sphi 0, %s46
      %s49 = sphi 0, %s48
      %s63 = sphi 0, %s49
      %s67 = sphi 0, %s67
      %s69 = sphi 0, %s67
      %s70 = sphi 0, %s69
      %s84 = sphi 0, %s70
      %s90 = sphi 0, %s92
      %s93 = sphi 0, %s90
      %s94 = sphi 0, %s93
      %s110 = sphi 0, %s94
    $region4: #{tpu_custom_call.1} parent=1 // loop_header_branch
      %15 = sbr.rel (%p13) target = $region8
    $region5: #{tpu_custom_call.1} parent=1 // loop_body
      %s17 = ssub.s32 %s12, 1
      %s18 = ssub.s32 %s12, 2
      %s19 = sadd.s32 %s12, 1
      %s20 = ssub.s32 %s12, %s19
      %p21 = scmp.eq.s32.totalorder %s20, 0
      %s23 = sadd.s32 %s22, 1
      %s24 = scalar_select %p21, %s22, %s23
      %p27 = pneg %p21
      %p28 = scmp.eq.s32.totalorder %s12, 1
      %p29 = por %p27, %p28
      %p30 = scmp.ne.s32.totalorder %s22, %s25
      %p31 = scmp.eq.s32.totalorder %s12, 0
      %p32 = por %p30, %p31
      %p33 = scmp.ne.s32.totalorder %s22, %s25
      %p34 = scmp.eq.s32.totalorder %s17, 1
      %p35 = por %p33, %p34
      %p36 = scmp.ne.s32.totalorder %s25, %s26
      %p37 = scmp.eq.s32.totalorder %s17, 0
      %p38 = por %p36, %p37
      %p39 = scmp.ne.s32.totalorder %s25, %s26
      %p40 = scmp.eq.s32.totalorder %s18, 1
      %p41 = por %p39, %p40
      %p43 = scmp.ne.s32.totalorder %s26, %s42
      %p44 = scmp.eq.s32.totalorder %s18, 0
      %p45 = por %p43, %p44
      %s47 = sadd.s32 %s46, 1
      %p50 = scmp.eq.s32.totalorder %s12, 1
      %p51 = scmp.ne.s32.totalorder %s46, %s48
      %p52 = scmp.eq.s32.totalorder %s12, 0
      %p53 = por %p51, %p52
      %p54 = scmp.ne.s32.totalorder %s46, %s48
      %p55 = scmp.eq.s32.totalorder %s17, 1
      %p56 = por %p54, %p55
      %p57 = scmp.ne.s32.totalorder %s48, %s49
      %p58 = scmp.eq.s32.totalorder %s17, 0
      %p59 = por %p57, %p58
      %p60 = scmp.ne.s32.totalorder %s48, %s49
      %p61 = scmp.eq.s32.totalorder %s18, 1
      %p62 = por %p60, %p61
      %p64 = scmp.ne.s32.totalorder %s49, %s63
      %p65 = scmp.eq.s32.totalorder %s18, 0
      %p66 = por %p64, %p65
      %s68 = sadd.s32 %s67, 1
      %p71 = scmp.eq.s32.totalorder %s12, 1
      %p72 = scmp.ne.s32.totalorder %s67, %s69
      %p73 = scmp.eq.s32.totalorder %s12, 0
      %p74 = por %p72, %p73
      %p75 = scmp.ne.s32.totalorder %s67, %s69
      %p76 = scmp.eq.s32.totalorder %s17, 1
      %p77 = por %p75, %p76
      %p78 = scmp.ne.s32.totalorder %s69, %s70
      %p79 = scmp.eq.s32.totalorder %s17, 0
      %p80 = por %p78, %p79
      %p81 = scmp.ne.s32.totalorder %s69, %s70
      %p82 = scmp.eq.s32.totalorder %s18, 1
      %p83 = por %p81, %p82
      %p85 = scmp.ne.s32.totalorder %s70, %s84
      %p86 = scmp.eq.s32.totalorder %s18, 0
      %p87 = por %p85, %p86
      %s88 = ssub.s32 %s12, %s19
      %p89 = scmp.eq.s32.totalorder %s88, 0
      %s91 = sadd.s32 %s90, 1
      %s92 = scalar_select %p89, %s90, %s91
      %p95 = pneg %p89
      %p96 = scmp.eq.s32.totalorder %s12, 1
      %p97 = por %p95, %p96
      %p98 = scmp.ne.s32.totalorder %s90, %s93
      %p99 = scmp.eq.s32.totalorder %s12, 0
      %p100 = por %p98, %p99
      %p101 = scmp.ne.s32.totalorder %s90, %s93
      %p102 = scmp.eq.s32.totalorder %s17, 1
      %p103 = por %p101, %p102
      %p104 = scmp.ne.s32.totalorder %s93, %s94
      %p105 = scmp.eq.s32.totalorder %s17, 0
      %p106 = por %p104, %p105
      %p107 = scmp.ne.s32.totalorder %s93, %s94
      %p108 = scmp.eq.s32.totalorder %s18, 1
      %p109 = por %p107, %p108
      %p111 = scmp.ne.s32.totalorder %s94, %s110
      %p112 = scmp.eq.s32.totalorder %s18, 0
      %p113 = por %p111, %p112
      %p114 = scmp.le.s32.totalorder 1, %s12
      %p115 = scmp.lt.s32.totalorder %s12, 3
      %p116 = pnand %p114, %p115
      %p117 = pneg %p116
      // Predicated region
      $region9: #{tpu_custom_call.1} parent=5 // pred_check
        _
      $region10: #{tpu_custom_call.1} parent=5 // pred_check_branch
        %119 = sbr.rel (%p116) target = $region12
      $region11: #{tpu_custom_call.1} parent=5 // pred_region
        %s120 = ssub.s32 %s12, 1
        // Predicated region
        $region13: #{tpu_custom_call.1} parent=11 // pred_check
          %p121 = pneg %p59
        $region14: #{tpu_custom_call.1} parent=11 // pred_check_branch
          %123 = sbr.rel (%p121) target = $region16
        $region15: #{tpu_custom_call.1} parent=11 // pred_region
          _
        $region16: #{tpu_custom_call.1} parent=11 // pred_fallthru
          _
        // Predicated region
        $region17: #{tpu_custom_call.1} parent=11 // pred_check
          %p124 = pneg %p80
        $region18: #{tpu_custom_call.1} parent=11 // pred_check_branch
          %126 = sbr.rel (%p124) target = $region20
        $region19: #{tpu_custom_call.1} parent=11 // pred_region
          _
        $region20: #{tpu_custom_call.1} parent=11 // pred_fallthru
          _
      $region12: #{tpu_custom_call.1} parent=5 // pred_fallthru
        _
      %p127 = scmp.lt.s32.totalorder %s12, 2
      // Predicated region
      $region21: #{tpu_custom_call.1} parent=5 // pred_check
        %p128 = pneg %p127
      $region22: #{tpu_custom_call.1} parent=5 // pred_check_branch
        %130 = sbr.rel (%p128) target = $region24
      $region23: #{tpu_custom_call.1} parent=5 // pred_region
        // Predicated region
        $region25: #{tpu_custom_call.1} parent=23 // pred_check
          %p131 = pneg %p32
        $region26: #{tpu_custom_call.1} parent=23 // pred_check_branch
          %133 = sbr.rel (%p131) target = $region28
        $region27: #{tpu_custom_call.1} parent=23 // pred_region
          %p134 = scmp.lt.s32.totalorder %s12, 1
          %s135 = scalar_select %p134, %s12, 1
          %s136 = smul.addr %s135, 8
          %s137 = scalar_lea.vmem %s0, %s136
        $region28: #{tpu_custom_call.1} parent=23 // pred_fallthru
          _
      $region24: #{tpu_custom_call.1} parent=5 // pred_fallthru
        _
      %p138 = scmp.le.s32.totalorder 1, %s12
      %p139 = scmp.lt.s32.totalorder %s12, 3
      %p140 = pnand %p138, %p139
      %p141 = pneg %p140
      // Predicated region
      $region29: #{tpu_custom_call.1} parent=5 // pred_check
        _
      $region30: #{tpu_custom_call.1} parent=5 // pred_check_branch
        %143 = sbr.rel (%p140) target = $region32
      $region31: #{tpu_custom_call.1} parent=5 // pred_region
        %s144 = ssub.s32 %s12, 1
        %p145 = scmp.lt.s32.totalorder %s17, 1
        %s146 = scalar_select %p145, %s17, 1
        %s147 = smul.addr %s146, 8
        %s148 = scalar_lea.vmem %s0, %s147
        %p149 = pneg %p38
        %p150 = pneg %p35
        %p151 = pneg %p59
        %p152 = pneg %p56
        %p153 = pneg %p80
        %p154 = pneg %p77
        %p155 = pneg %p106
        %p156 = pneg %p103
        %s157 = sand.u32 %s93, 1
        %s158 = scalar_lea.sflag [#allocation4], %s157
        %s159 = sand.u32 %s93, 1
        %s160 = smul.addr %s159, 8
        %s161 = scalar_lea.vmem [#allocation3], %s160
        %p162 = scmp.lt.s32.totalorder %s17, 1
        %s163 = scalar_select %p162, %s17, 1
        %s164 = smul.addr %s163, 8
        %s165 = scalar_lea.vmem %s0, %s164
        %vm166 = vcmask 7168
        %167 = vst.msk [vmem:[#allocation2] sm:$0xff] %vm166, 0.0
        %v168 = vld [vmem:[%s165] sm:$0xff]
        %170 = vrot.lane.b32.xlu0 %v168, 1
        %v171 = vpop.permute.xlu0 %170
        %vm173 = vcmask 1047560
        %174 = vst.msk [vmem:[#allocation2] sm:$0xff] %vm173, %v171
        %v175 = vld [vmem:[%s165] sm:$0xff]
        %176 = vst [vmem:[#allocation2 + $0x8] sm:$0xff] %v175
        %vm177 = vcmask 1048568
        %178 = vst.msk [vmem:[#allocation2 + $0x10] sm:$0xff] %vm177, 0.0
        %v179 = vld [vmem:[%s165] sm:$0xff]
        %181 = vrot.lane.b32.xlu0 %v179, 127
        %v182 = vpop.permute.xlu0 %181
        %vm184 = vcmask 1039360
        %185 = vst.msk [vmem:[#allocation2 + $0x10] sm:$0xff] %vm184, %v182
        %v186 = vld [vmem:[%s1] sm:$0xff]
        %v187 = vld [vmem:[#allocation2] sm:$0xff]
        %v188 = vld [vmem:[#allocation2 + $0x8] sm:$0xff]
        %v189 = vld [vmem:[#allocation2 + $0x10] sm:$0xff]
        %vm190 = vcmask 195584
        %v192 = vsel %vm190, %v186, 0
        %194 = vmatprep.subr.mxu0 0.0
        %195 = vmatpush1.msra.mxu0 0.0
        %196 = vmatprep.subr.mxu0 0.0
        %197 = vmatpush1.msra.mxu0 0.0
        %198 = vmatprep.subr.mxu0 0.0
        %199 = vmatpush1.msra.mxu0 0.0
        %200 = vmatprep.subr.mxu0 0.0
        %201 = vmatpush1.msra.mxu0 0.0
        %202 = vmatprep.subr.mxu0 0.0
        %203 = vmatpush1.msra.mxu0 0.0
        %204 = vmatprep.subr.mxu0 0.0
        %205 = vmatpush1.msra.mxu0 0.0
        %206 = vmatprep.subr.mxu0 0.0
        %207 = vmatpush1.msra.mxu0 0.0
        %208 = vmatprep.subr.mxu0 0.0
        %209 = vmatpush1.msra.mxu0 0.0
        %210 = vmatprep.subr.mxu0 0.0
        %211 = vmatpush1.msra.mxu0 0.0
        %212 = vmatprep.subr.mxu0 0.0
        %213 = vmatpush1.msra.mxu0 0.0
        %214 = vmatprep.subr.mxu0 0.0
        %215 = vmatpush1.msra.mxu0 0.0
        %216 = vmatprep.subr.mxu0 0.0
        %217 = vmatpush1.msra.mxu0 0.0
        %218 = vmatprep.subr.mxu0 0.0
        %219 = vmatpush1.msra.mxu0 0.0
        %220 = vmatprep.subr.mxu0 0.0
        %221 = vmatpush1.msra.mxu0 %v189
        %222 = vmatprep.subr.mxu0 0.0
        %223 = vmatpush1.msra.mxu0 %v188
        %224 = vmatprep.subr.mxu0 0.0
        %225 = vmatpush1.msra.mxu0 %v187
        %226 = vmatprep.subr.mxu0 0.0
        %227 = vmatpush2.msra.mxu0 0.0
        %228 = vmatprep.subr.mxu0 0.0
        %229 = vmatpush2.msra.mxu0 0.0
        %230 = vmatprep.subr.mxu0 0.0
        %231 = vmatpush2.msra.mxu0 0.0
        %232 = vmatprep.subr.mxu0 0.0
        %233 = vmatpush2.msra.mxu0 0.0
        %234 = vmatprep.subr.mxu0 0.0
        %235 = vmatpush2.msra.mxu0 0.0
        %236 = vmatprep.subr.mxu0 0.0
        %237 = vmatpush2.msra.mxu0 0.0
        %238 = vmatprep.subr.mxu0 0.0
        %239 = vmatpush2.msra.mxu0 0.0
        %240 = vmatprep.subr.mxu0 0.0
        %241 = vmatpush2.msra.mxu0 0.0
        %242 = vmatprep.subr.mxu0 0.0
        %243 = vmatpush2.msra.mxu0 0.0
        %244 = vmatprep.subr.mxu0 0.0
        %245 = vmatpush2.msra.mxu0 0.0
        %246 = vmatprep.subr.mxu0 0.0
        %247 = vmatpush2.msra.mxu0 0.0
        %248 = vmatprep.subr.mxu0 0.0
        %249 = vmatpush2.msra.mxu0 0.0
        %250 = vmatprep.subr.mxu0 0.0
        %251 = vmatpush2.msra.mxu0 0.0
        %252 = vmatprep.subr.mxu0 0.0
        %253 = vmatpush2.msra.mxu0 0.0
        %254 = vmatprep.subr.mxu0 0.0
        %255 = vmatpush2.msra.mxu0 0.0
        %256 = vmatprep.subr.mxu0 0.0
        %257 = vmatpush2.msra.mxu0 0.0
        %258 = vmatprep.mubr.f32.mxu0 0.0
        %259 = vmatmul.mubr.f32.gmra.mxu0 %v192
        %v260 = vpop.f32.mrf.mxu0
        %v261 = vadd.f32 0.0, %v260
        %v262 = vpop.f32.mrf.mxu0
        %263 = vdwg.mxu0
        %264 = vadd.xlane.f32.xlu0 %v261
        %v265 = vpop.xlane.xlu0 %264
        %v266 = vrcp.pop 128.0
        %v267 = vmul.f32 %v265, %v266
        %v268 = vmul.f32 %v261, %v261
        %269 = vadd.xlane.f32.xlu0 %v268
        %v270 = vpop.xlane.xlu0 %269
        %v271 = vmul.f32 %v270, %v266
        %v272 = vmul.f32 %v267, %v267
        %v273 = vsub.f32 %v271, %v272
        %v274 = vmax.f32 %v273, 0.0
        %v275 = vadd.f32 %v274, 1e-05
        %v276 = vrsqrt.pop %v275
        %s277 = scalar_lea.vmem %s2, 8
        %v278 = vld [vmem:[%s277] sm:$0xff]
        %v279 = vmul.f32 %v276, %v278
        %s280 = scalar_lea.vmem %s2, 16
        %v281 = vld [vmem:[%s280] sm:$0xff]
        %v282 = vmul.f32 %v267, %v279
        %v283 = vsub.f32 %v281, %v282
        %285 = vset.pattern.permute.xlu0 0
        %286 = vperm.xlu0 %285, %v279
        %v287 = vpop.permute.xlu0 %286
        %v289 = vmul.f32 %v261, %v287
        %291 = vset.pattern.permute.xlu0 0
        %292 = vperm.xlu0 %291, %v283
        %v293 = vpop.permute.xlu0 %292
        %v295 = vadd.f32 %v289, %v293
        %v296 = vmax.f32 %v295, 0.0
        %v297 = vld [vmem:[%s165] sm:$0xff]
        %v298 = vadd.f32 %v296, %v297
        %299 = vst [vmem:[%s161] sm:$0xff] %v298
        %s300 = sand.u32 %s93, 1
        %s301 = scalar_lea.sflag [#allocation4], %s300
        %s302 = sand.u32 %s93, 1
        %s303 = smul.addr %s302, 8
        %s304 = scalar_lea.vmem [#allocation3], %s303
        // Predicated region
        $region33: #{tpu_custom_call.1} parent=31 // pred_check
          %p305 = pneg %p103
        $region34: #{tpu_custom_call.1} parent=31 // pred_check_branch
          %307 = sbr.rel (%p305) target = $region36
        $region35: #{tpu_custom_call.1} parent=31 // pred_region
          %s309 = ssub.s32 128, 128
          %310 = vsyncadd %s301, %s309
          %s311 = smul.addr %s17, 128
          %s312 = scalar_lea.hbm %s3, %s311
          %s314 = sshll.u32 %s304, 4
          %s315 = int_to_ptr.vmem [resolvable:$true] %s314
          %317 = dma.vmem_to_hbm [thread:$0]  %s315, 128, %s312, %s301
        $region36: #{tpu_custom_call.1} parent=31 // pred_fallthru
          _
      $region32: #{tpu_custom_call.1} parent=5 // pred_fallthru
        _
      %p318 = scmp.le.s32.totalorder 2, %s12
      // Predicated region
      $region37: #{tpu_custom_call.1} parent=5 // pred_check
        %p319 = pneg %p318
      $region38: #{tpu_custom_call.1} parent=5 // pred_check_branch
        %321 = sbr.rel (%p319) target = $region40
      $region39: #{tpu_custom_call.1} parent=5 // pred_region
        %s322 = ssub.s32 %s12, 2
        // Predicated region
        $region41: #{tpu_custom_call.1} parent=39 // pred_check
          %p323 = pneg %p109
        $region42: #{tpu_custom_call.1} parent=39 // pred_check_branch
          %325 = sbr.rel (%p323) target = $region44
        $region43: #{tpu_custom_call.1} parent=39 // pred_region
          %s326 = sand.u32 %s94, 1
          %s327 = scalar_lea.sflag [#allocation4], %s326
          %s328 = sand.u32 %s94, 1
          %s329 = smul.addr %s328, 8
          %s330 = scalar_lea.vmem [#allocation3], %s329
          %331 = dma.done %s327, 128
        $region44: #{tpu_custom_call.1} parent=39 // pred_fallthru
          _
      $region40: #{tpu_custom_call.1} parent=5 // pred_fallthru
        _
    $region6: #{tpu_custom_call.1} parent=1 // loop_footer
      %s16 = sadd.s32 1, %s12
    $region7: #{tpu_custom_call.1} parent=1 // loop_footer_branch
      %11 = sbr.rel target = $region3
    $region8: #{tpu_custom_call.1} parent=1 // loop_exit
      _
    %332 = vsyncpa [#allocation4], 1
    %s333 = scalar_lea.sflag [#allocation4], 1
    %334 = vsyncpa %s333, 1

</llo_original>
